<compile_context>
chip_gen: v7x
topology: tpu7x:2x2x1
jax: 0.10.0
libtpu: 0.0.40
codegen_flags: <defaults>
</compile_context>

<pallas_src>
import math
import functools

import jax
import jax.numpy as jnp
from jax.experimental import pallas as pl
from jax.experimental.pallas import tpu as pltpu


def _mha_kernel(x_ref, w_ref, b_ref, o_ref, *, n_head, head_dim):
    """x_ref: (TM, H*D) lane-dense token tile.  w_ref: (H*D, 3*H*D) block-diag fused QKV
    weights (bf16).  b_ref: (1, 3*H*D) fused bias (f32).  o_ref: (TM, H*D)."""
    H, D = n_head, head_dim
    HD = H * D

    x = x_ref[...]                                  # (TM, HD)
    w = w_ref[...]                                  # (HD, 3*HD), compute dtype (bf16)

    # Single MXU matmul: full 128-wide contraction, f32 accumulation.
    qkv = jax.lax.dot_general(
        x.astype(w.dtype), w,
        dimension_numbers=(((1,), (0,)), ((), ())),
        preferred_element_type=jnp.float32)         # (TM, 3*HD) f32
    qkv = qkv + b_ref[...]                          # one fused bias add

    q = qkv[:, 0:HD]                                # (TM, HD)  head h lives in lanes h*D:(h+1)*D
    k = qkv[:, HD:2 * HD]
    v = qkv[:, 2 * HD:3 * HD]

    scale = 1.0 / math.sqrt(D)

    # Head-mixing "attention" (no softmax) on the VPU/XLU: for each (h, g) pair,
    # attn[m,h,g] = <q_h[m,:], k_g[m,:]> / sqrt(D), then out_h += attn[:,h,g] * v_g.
    # H=4 -> 16 small unrolled iterations; keeps the MXU free for the QKV matmul.
    out_heads = []
    for h in range(H):
        qh = q[:, h * D:(h + 1) * D]                # (TM, D)
        acc = None
        for g in range(H):
            kg = k[:, g * D:(g + 1) * D]
            vg = v[:, g * D:(g + 1) * D]
            a_hg = jnp.sum(qh * kg, axis=-1, keepdims=True) * scale   # (TM, 1)
            term = a_hg * vg                        # (TM, D)
            acc = term if acc is None else acc + term
        out_heads.append(acc)

    out = jnp.concatenate(out_heads, axis=-1)       # (TM, HD), lane-dense single store
    o_ref[...] = out.astype(o_ref.dtype)


def _build_fused_params(wq, wk, wv, bq, bk, bv, *, n_head, compute_dtype):
    """Fold per-head Linear(D, D) (PyTorch (out,in) layout) into one block-diagonal
    (H*D, 3*H*D) matrix so that  x_flat @ W_fused  ==  concat_h(x_h @ w.T)  for q|k|v,
    plus a fused (1, 3*H*D) bias."""
    D = wq.shape[0]
    eye = jnp.eye(n_head, dtype=jnp.float32)

    def blockdiag(w):                                # kron(I_H, w.T): (H*D, H*D)
        return jnp.kron(eye, w.T.astype(jnp.float32))

    w_fused = jnp.concatenate(
        [blockdiag(wq), blockdiag(wk), blockdiag(wv)], axis=1)          # (HD, 3*HD)

    def tiled_bias(b):
        return jnp.tile(b.reshape(1, D).astype(jnp.float32), (1, n_head))

    b_fused = jnp.concatenate(
        [tiled_bias(bq), tiled_bias(bk), tiled_bias(bv)], axis=1)       # (1, 3*HD)

    return w_fused.astype(compute_dtype), b_fused


def _round_up(a, b):
    return (a + b - 1) // b * b


def multi_head_attention(x, wq, wk, wv, bq, bk, bv, *, n_head,
                         tile_m=512, compute_dtype=jnp.bfloat16):
    """x: (B, N, n_head*D) -> (B, N, n_head, D), matching the PyTorch module."""
    B, N, d_total = x.shape
    assert d_total % n_head == 0
    D = d_total // n_head
    HD = n_head * D
    M = B * N

    w_fused, b_fused = _build_fused_params(
        wq, wk, wv, bq, bk, bv, n_head=n_head, compute_dtype=compute_dtype)

    # Lane-dense host layout: (M, H*D); reshape to heads only after the kernel.
    x2 = x.reshape(M, HD)

    # Tile sizing + padding (no divisibility requirement on M).
    tm = min(tile_m, _round_up(M, 8))
    M_pad = _round_up(M, tm)
    if M_pad != M:
        x2 = jnp.pad(x2, ((0, M_pad - M), (0, 0)))

    grid = (M_pad // tm,)

    itemsize = jnp.dtype(x.dtype).itemsize
    flops = int(2 * M_pad * HD * 3 * HD                       # fused QKV matmul
                + 4 * M_pad * n_head * n_head * D)            # head-mixing attention
    bytes_accessed = int(M_pad * HD * itemsize * 2            # x in + out
                         + w_fused.size * jnp.dtype(w_fused.dtype).itemsize
                         + b_fused.size * 4)

    kernel = functools.partial(_mha_kernel, n_head=n_head, head_dim=D)

    out2 = pl.pallas_call(
        kernel,
        out_shape=jax.ShapeDtypeStruct((M_pad, HD), x.dtype),
        grid=grid,
        in_specs=[
            pl.BlockSpec((tm, HD), lambda i: (i, 0)),          # x tile (lane-dense)
            pl.BlockSpec((HD, 3 * HD), lambda i: (0, 0)),      # fused QKV weight (resident)
            pl.BlockSpec((1, 3 * HD), lambda i: (0, 0)),       # fused bias (resident)
        ],
        out_specs=pl.BlockSpec((tm, HD), lambda i: (i, 0)),
        compiler_params=pltpu.CompilerParams(
            dimension_semantics=("parallel",)),
        cost_estimate=pl.CostEstimate(
            flops=flops, transcendentals=0, bytes_accessed=bytes_accessed),
    )(x2, w_fused, b_fused)

    return out2[:M].reshape(B, N, n_head, D)


def reference_forward(x, wq, wk, wv, bq, bk, bv, *, n_head, proj_dtype=jnp.float32):
    """Pure-JAX mirror of the PyTorch forward, for validation.  proj_dtype lets us
    also build a matched-precision (bf16-projection) reference."""
    B, N, d_total = x.shape
    D = d_total // n_head
    xh = x.reshape(B, N, n_head, D)

    def lin(w, b):
        y = jax.lax.dot_general(
            xh.astype(proj_dtype), w.astype(proj_dtype),
            dimension_numbers=(((3,), (1,)), ((), ())),
            preferred_element_type=jnp.float32)
        return y + b.reshape(1, 1, 1, D).astype(jnp.float32)

    q, k, v = lin(wq, bq), lin(wk, bk), lin(wv, bv)
    attn = jnp.einsum('bnhd,bngd->bnhg', q, k,
                      preferred_element_type=jnp.float32) / math.sqrt(D)
    out = jnp.einsum('bnhg,bngd->bnhd', attn, v,
                     preferred_element_type=jnp.float32)
    return out.astype(x.dtype)


if __name__ == "__main__":
    # Shapes consistent with the module: per-head Linear dim D = 32, n_head = 4,
    # so the input feature size is n_head * D = 128.
    B, N, n_head, D = 2, 8, 4, 32

    key = jax.random.PRNGKey(0)
    kx, kwq, kwk, kwv, kbq, kbk, kbv = jax.random.split(key, 7)

    x = jax.random.normal(kx, (B, N, n_head * D), dtype=jnp.float32)

    # Deterministic synthetic Linear params, PyTorch-style uniform(-1/sqrt(D), 1/sqrt(D)).
    bound = 1.0 / math.sqrt(D)
    wq = jax.random.uniform(kwq, (D, D), jnp.float32, -bound, bound)
    wk = jax.random.uniform(kwk, (D, D), jnp.float32, -bound, bound)
    wv = jax.random.uniform(kwv, (D, D), jnp.float32, -bound, bound)
    bq = jax.random.uniform(kbq, (D,), jnp.float32, -bound, bound)
    bk = jax.random.uniform(kbk, (D,), jnp.float32, -bound, bound)
    bv = jax.random.uniform(kbv, (D,), jnp.float32, -bound, bound)

    out = multi_head_attention(x, wq, wk, wv, bq, bk, bv, n_head=n_head)
    out = jax.block_until_ready(out)
    assert out.shape == (B, N, n_head, D), out.shape

    # Tight check vs a matched-precision (bf16 projection, f32 accumulation) reference.
    ref_bf16 = reference_forward(x, wq, wk, wv, bq, bk, bv,
                                 n_head=n_head, proj_dtype=jnp.bfloat16)
    err_tight = float(jnp.max(jnp.abs(out - ref_bf16)))
    assert err_tight < 1e-3, err_tight

    # Loose check vs the pure-f32 reference (bf16 MXU inputs -> ~1e-2-level error budget).
    ref_f32 = reference_forward(x, wq, wk, wv, bq, bk, bv,
                                n_head=n_head, proj_dtype=jnp.float32)
    err_loose = float(jnp.max(jnp.abs(out - ref_f32)))
    assert err_loose < 3e-2, err_loose

    print("KERNEL_OK")
</pallas_src>

<mosaic_0001>
module attributes {stable_mosaic.version = 11 : i64} {
  func.func @_mha_kernel(%arg0: i32, %arg1: memref<16x128xf32, #tpu.memory_space<vmem>>, %arg2: memref<128x384xbf16, #tpu.memory_space<vmem>>, %arg3: memref<1x384xf32, #tpu.memory_space<vmem>>, %arg4: memref<16x128xf32, #tpu.memory_space<vmem>>) attributes {dimension_semantics = [#tpu.dimension_semantics<parallel>], iteration_bounds = array<i64: 1>, scalar_prefetch = 0 : i64, scratch_operands = 0 : i64, tpu.core_type = #tpu.core_type<tc>, window_params = [{transform_indices = @transform_0, window_bounds = array<i64: 16, 128>}, {pipeline_mode = #tpu.pipeline_mode<synchronous>, transform_indices = @transform_1, window_bounds = array<i64: 128, 384>}, {pipeline_mode = #tpu.pipeline_mode<synchronous>, transform_indices = @transform_2, window_bounds = array<i64: 1, 384>}, {transform_indices = @transform_3, window_bounds = array<i64: 16, 128>}]} {
    %c0 = arith.constant 0 : index
    %c0_0 = arith.constant 0 : index
    %0 = vector.load %arg1[%c0, %c0_0] : memref<16x128xf32, #tpu.memory_space<vmem>>, vector<16x128xf32>
    %c0_1 = arith.constant 0 : index
    %c0_2 = arith.constant 0 : index
    %1 = vector.load %arg2[%c0_1, %c0_2] : memref<128x384xbf16, #tpu.memory_space<vmem>>, vector<128x384xbf16>
    %2 = arith.truncf %0 : vector<16x128xf32> to vector<16x128xbf16>
    %cst = arith.constant dense<0.000000e+00> : vector<16x384xf32>
    %3 = tpu.matmul %2, %1, %cst {dimension_numbers = #tpu.dot_dimension_numbers<[1], [0], [0], [1], [0, 0, 1, 1], [], []>} : vector<16x128xbf16>, vector<128x384xbf16>, vector<16x384xf32> -> vector<16x384xf32>
    %c0_3 = arith.constant 0 : index
    %c0_4 = arith.constant 0 : index
    %4 = vector.load %arg3[%c0_3, %c0_4] : memref<1x384xf32, #tpu.memory_space<vmem>>, vector<1x384xf32>
    %5 = vector.broadcast %4 : vector<1x384xf32> to vector<16x384xf32>
    %6 = arith.addf %3, %5 : vector<16x384xf32>
    %7 = vector.extract_strided_slice %6 {offsets = [0, 0], sizes = [16, 128], strides = [1, 1]} : vector<16x384xf32> to vector<16x128xf32>
    %8 = vector.extract_strided_slice %6 {offsets = [0, 128], sizes = [16, 128], strides = [1, 1]} : vector<16x384xf32> to vector<16x128xf32>
    %9 = vector.extract_strided_slice %6 {offsets = [0, 256], sizes = [16, 128], strides = [1, 1]} : vector<16x384xf32> to vector<16x128xf32>
    %10 = vector.extract_strided_slice %7 {offsets = [0, 0], sizes = [16, 32], strides = [1, 1]} : vector<16x128xf32> to vector<16x32xf32>
    %11 = vector.extract_strided_slice %8 {offsets = [0, 0], sizes = [16, 32], strides = [1, 1]} : vector<16x128xf32> to vector<16x32xf32>
    %12 = vector.extract_strided_slice %9 {offsets = [0, 0], sizes = [16, 32], strides = [1, 1]} : vector<16x128xf32> to vector<16x32xf32>
    %13 = arith.mulf %10, %11 : vector<16x32xf32>
    %cst_5 = arith.constant dense<0.000000e+00> : vector<16xf32>
    %14 = vector.multi_reduction <add>, %13, %cst_5 [1] : vector<16x32xf32> to vector<16xf32>
    %15 = vector.shape_cast %14 : vector<16xf32> to vector<16x1xf32>
    %cst_6 = arith.constant 0.176776692 : f32
    %16 = vector.broadcast %cst_6 : f32 to vector<16x1xf32>
    %17 = arith.mulf %15, %16 : vector<16x1xf32>
    %18 = vector.broadcast %17 : vector<16x1xf32> to vector<16x32xf32>
    %19 = arith.mulf %18, %12 : vector<16x32xf32>
    %20 = vector.extract_strided_slice %8 {offsets = [0, 32], sizes = [16, 32], strides = [1, 1]} : vector<16x128xf32> to vector<16x32xf32>
    %21 = vector.extract_strided_slice %9 {offsets = [0, 32], sizes = [16, 32], strides = [1, 1]} : vector<16x128xf32> to vector<16x32xf32>
    %22 = arith.mulf %10, %20 : vector<16x32xf32>
    %cst_7 = arith.constant dense<0.000000e+00> : vector<16xf32>
    %23 = vector.multi_reduction <add>, %22, %cst_7 [1] : vector<16x32xf32> to vector<16xf32>
    %24 = vector.shape_cast %23 : vector<16xf32> to vector<16x1xf32>
    %cst_8 = arith.constant 0.176776692 : f32
    %25 = vector.broadcast %cst_8 : f32 to vector<16x1xf32>
    %26 = arith.mulf %24, %25 : vector<16x1xf32>
    %27 = vector.broadcast %26 : vector<16x1xf32> to vector<16x32xf32>
    %28 = arith.mulf %27, %21 : vector<16x32xf32>
    %29 = arith.addf %19, %28 : vector<16x32xf32>
    %30 = vector.extract_strided_slice %8 {offsets = [0, 64], sizes = [16, 32], strides = [1, 1]} : vector<16x128xf32> to vector<16x32xf32>
    %31 = vector.extract_strided_slice %9 {offsets = [0, 64], sizes = [16, 32], strides = [1, 1]} : vector<16x128xf32> to vector<16x32xf32>
    %32 = arith.mulf %10, %30 : vector<16x32xf32>
    %cst_9 = arith.constant dense<0.000000e+00> : vector<16xf32>
    %33 = vector.multi_reduction <add>, %32, %cst_9 [1] : vector<16x32xf32> to vector<16xf32>
    %34 = vector.shape_cast %33 : vector<16xf32> to vector<16x1xf32>
    %cst_10 = arith.constant 0.176776692 : f32
    %35 = vector.broadcast %cst_10 : f32 to vector<16x1xf32>
    %36 = arith.mulf %34, %35 : vector<16x1xf32>
    %37 = vector.broadcast %36 : vector<16x1xf32> to vector<16x32xf32>
    %38 = arith.mulf %37, %31 : vector<16x32xf32>
    %39 = arith.addf %29, %38 : vector<16x32xf32>
    %40 = vector.extract_strided_slice %8 {offsets = [0, 96], sizes = [16, 32], strides = [1, 1]} : vector<16x128xf32> to vector<16x32xf32>
    %41 = vector.extract_strided_slice %9 {offsets = [0, 96], sizes = [16, 32], strides = [1, 1]} : vector<16x128xf32> to vector<16x32xf32>
    %42 = arith.mulf %10, %40 : vector<16x32xf32>
    %cst_11 = arith.constant dense<0.000000e+00> : vector<16xf32>
    %43 = vector.multi_reduction <add>, %42, %cst_11 [1] : vector<16x32xf32> to vector<16xf32>
    %44 = vector.shape_cast %43 : vector<16xf32> to vector<16x1xf32>
    %cst_12 = arith.constant 0.176776692 : f32
    %45 = vector.broadcast %cst_12 : f32 to vector<16x1xf32>
    %46 = arith.mulf %44, %45 : vector<16x1xf32>
    %47 = vector.broadcast %46 : vector<16x1xf32> to vector<16x32xf32>
    %48 = arith.mulf %47, %41 : vector<16x32xf32>
    %49 = arith.addf %39, %48 : vector<16x32xf32>
    %50 = vector.extract_strided_slice %7 {offsets = [0, 32], sizes = [16, 32], strides = [1, 1]} : vector<16x128xf32> to vector<16x32xf32>
    %51 = vector.extract_strided_slice %8 {offsets = [0, 0], sizes = [16, 32], strides = [1, 1]} : vector<16x128xf32> to vector<16x32xf32>
    %52 = vector.extract_strided_slice %9 {offsets = [0, 0], sizes = [16, 32], strides = [1, 1]} : vector<16x128xf32> to vector<16x32xf32>
    %53 = arith.mulf %50, %51 : vector<16x32xf32>
    %cst_13 = arith.constant dense<0.000000e+00> : vector<16xf32>
    %54 = vector.multi_reduction <add>, %53, %cst_13 [1] : vector<16x32xf32> to vector<16xf32>
    %55 = vector.shape_cast %54 : vector<16xf32> to vector<16x1xf32>
    %cst_14 = arith.constant 0.176776692 : f32
    %56 = vector.broadcast %cst_14 : f32 to vector<16x1xf32>
    %57 = arith.mulf %55, %56 : vector<16x1xf32>
    %58 = vector.broadcast %57 : vector<16x1xf32> to vector<16x32xf32>
    %59 = arith.mulf %58, %52 : vector<16x32xf32>
    %60 = vector.extract_strided_slice %8 {offsets = [0, 32], sizes = [16, 32], strides = [1, 1]} : vector<16x128xf32> to vector<16x32xf32>
    %61 = vector.extract_strided_slice %9 {offsets = [0, 32], sizes = [16, 32], strides = [1, 1]} : vector<16x128xf32> to vector<16x32xf32>
    %62 = arith.mulf %50, %60 : vector<16x32xf32>
    %cst_15 = arith.constant dense<0.000000e+00> : vector<16xf32>
    %63 = vector.multi_reduction <add>, %62, %cst_15 [1] : vector<16x32xf32> to vector<16xf32>
    %64 = vector.shape_cast %63 : vector<16xf32> to vector<16x1xf32>
    %cst_16 = arith.constant 0.176776692 : f32
    %65 = vector.broadcast %cst_16 : f32 to vector<16x1xf32>
    %66 = arith.mulf %64, %65 : vector<16x1xf32>
    %67 = vector.broadcast %66 : vector<16x1xf32> to vector<16x32xf32>
    %68 = arith.mulf %67, %61 : vector<16x32xf32>
    %69 = arith.addf %59, %68 : vector<16x32xf32>
    %70 = vector.extract_strided_slice %8 {offsets = [0, 64], sizes = [16, 32], strides = [1, 1]} : vector<16x128xf32> to vector<16x32xf32>
    %71 = vector.extract_strided_slice %9 {offsets = [0, 64], sizes = [16, 32], strides = [1, 1]} : vector<16x128xf32> to vector<16x32xf32>
    %72 = arith.mulf %50, %70 : vector<16x32xf32>
    %cst_17 = arith.constant dense<0.000000e+00> : vector<16xf32>
    %73 = vector.multi_reduction <add>, %72, %cst_17 [1] : vector<16x32xf32> to vector<16xf32>
    %74 = vector.shape_cast %73 : vector<16xf32> to vector<16x1xf32>
    %cst_18 = arith.constant 0.176776692 : f32
    %75 = vector.broadcast %cst_18 : f32 to vector<16x1xf32>
    %76 = arith.mulf %74, %75 : vector<16x1xf32>
    %77 = vector.broadcast %76 : vector<16x1xf32> to vector<16x32xf32>
    %78 = arith.mulf %77, %71 : vector<16x32xf32>
    %79 = arith.addf %69, %78 : vector<16x32xf32>
    %80 = vector.extract_strided_slice %8 {offsets = [0, 96], sizes = [16, 32], strides = [1, 1]} : vector<16x128xf32> to vector<16x32xf32>
    %81 = vector.extract_strided_slice %9 {offsets = [0, 96], sizes = [16, 32], strides = [1, 1]} : vector<16x128xf32> to vector<16x32xf32>
    %82 = arith.mulf %50, %80 : vector<16x32xf32>
    %cst_19 = arith.constant dense<0.000000e+00> : vector<16xf32>
    %83 = vector.multi_reduction <add>, %82, %cst_19 [1] : vector<16x32xf32> to vector<16xf32>
    %84 = vector.shape_cast %83 : vector<16xf32> to vector<16x1xf32>
    %cst_20 = arith.constant 0.176776692 : f32
    %85 = vector.broadcast %cst_20 : f32 to vector<16x1xf32>
    %86 = arith.mulf %84, %85 : vector<16x1xf32>
    %87 = vector.broadcast %86 : vector<16x1xf32> to vector<16x32xf32>
    %88 = arith.mulf %87, %81 : vector<16x32xf32>
    %89 = arith.addf %79, %88 : vector<16x32xf32>
    %90 = vector.extract_strided_slice %7 {offsets = [0, 64], sizes = [16, 32], strides = [1, 1]} : vector<16x128xf32> to vector<16x32xf32>
    %91 = vector.extract_strided_slice %8 {offsets = [0, 0], sizes = [16, 32], strides = [1, 1]} : vector<16x128xf32> to vector<16x32xf32>
    %92 = vector.extract_strided_slice %9 {offsets = [0, 0], sizes = [16, 32], strides = [1, 1]} : vector<16x128xf32> to vector<16x32xf32>
    %93 = arith.mulf %90, %91 : vector<16x32xf32>
    %cst_21 = arith.constant dense<0.000000e+00> : vector<16xf32>
    %94 = vector.multi_reduction <add>, %93, %cst_21 [1] : vector<16x32xf32> to vector<16xf32>
    %95 = vector.shape_cast %94 : vector<16xf32> to vector<16x1xf32>
    %cst_22 = arith.constant 0.176776692 : f32
    %96 = vector.broadcast %cst_22 : f32 to vector<16x1xf32>
    %97 = arith.mulf %95, %96 : vector<16x1xf32>
    %98 = vector.broadcast %97 : vector<16x1xf32> to vector<16x32xf32>
    %99 = arith.mulf %98, %92 : vector<16x32xf32>
    %100 = vector.extract_strided_slice %8 {offsets = [0, 32], sizes = [16, 32], strides = [1, 1]} : vector<16x128xf32> to vector<16x32xf32>
    %101 = vector.extract_strided_slice %9 {offsets = [0, 32], sizes = [16, 32], strides = [1, 1]} : vector<16x128xf32> to vector<16x32xf32>
    %102 = arith.mulf %90, %100 : vector<16x32xf32>
    %cst_23 = arith.constant dense<0.000000e+00> : vector<16xf32>
    %103 = vector.multi_reduction <add>, %102, %cst_23 [1] : vector<16x32xf32> to vector<16xf32>
    %104 = vector.shape_cast %103 : vector<16xf32> to vector<16x1xf32>
    %cst_24 = arith.constant 0.176776692 : f32
    %105 = vector.broadcast %cst_24 : f32 to vector<16x1xf32>
    %106 = arith.mulf %104, %105 : vector<16x1xf32>
    %107 = vector.broadcast %106 : vector<16x1xf32> to vector<16x32xf32>
    %108 = arith.mulf %107, %101 : vector<16x32xf32>
    %109 = arith.addf %99, %108 : vector<16x32xf32>
    %110 = vector.extract_strided_slice %8 {offsets = [0, 64], sizes = [16, 32], strides = [1, 1]} : vector<16x128xf32> to vector<16x32xf32>
    %111 = vector.extract_strided_slice %9 {offsets = [0, 64], sizes = [16, 32], strides = [1, 1]} : vector<16x128xf32> to vector<16x32xf32>
    %112 = arith.mulf %90, %110 : vector<16x32xf32>
    %cst_25 = arith.constant dense<0.000000e+00> : vector<16xf32>
    %113 = vector.multi_reduction <add>, %112, %cst_25 [1] : vector<16x32xf32> to vector<16xf32>
    %114 = vector.shape_cast %113 : vector<16xf32> to vector<16x1xf32>
    %cst_26 = arith.constant 0.176776692 : f32
    %115 = vector.broadcast %cst_26 : f32 to vector<16x1xf32>
    %116 = arith.mulf %114, %115 : vector<16x1xf32>
    %117 = vector.broadcast %116 : vector<16x1xf32> to vector<16x32xf32>
    %118 = arith.mulf %117, %111 : vector<16x32xf32>
    %119 = arith.addf %109, %118 : vector<16x32xf32>
    %120 = vector.extract_strided_slice %8 {offsets = [0, 96], sizes = [16, 32], strides = [1, 1]} : vector<16x128xf32> to vector<16x32xf32>
    %121 = vector.extract_strided_slice %9 {offsets = [0, 96], sizes = [16, 32], strides = [1, 1]} : vector<16x128xf32> to vector<16x32xf32>
    %122 = arith.mulf %90, %120 : vector<16x32xf32>
    %cst_27 = arith.constant dense<0.000000e+00> : vector<16xf32>
    %123 = vector.multi_reduction <add>, %122, %cst_27 [1] : vector<16x32xf32> to vector<16xf32>
    %124 = vector.shape_cast %123 : vector<16xf32> to vector<16x1xf32>
    %cst_28 = arith.constant 0.176776692 : f32
    %125 = vector.broadcast %cst_28 : f32 to vector<16x1xf32>
    %126 = arith.mulf %124, %125 : vector<16x1xf32>
    %127 = vector.broadcast %126 : vector<16x1xf32> to vector<16x32xf32>
    %128 = arith.mulf %127, %121 : vector<16x32xf32>
    %129 = arith.addf %119, %128 : vector<16x32xf32>
    %130 = vector.extract_strided_slice %7 {offsets = [0, 96], sizes = [16, 32], strides = [1, 1]} : vector<16x128xf32> to vector<16x32xf32>
    %131 = vector.extract_strided_slice %8 {offsets = [0, 0], sizes = [16, 32], strides = [1, 1]} : vector<16x128xf32> to vector<16x32xf32>
    %132 = vector.extract_strided_slice %9 {offsets = [0, 0], sizes = [16, 32], strides = [1, 1]} : vector<16x128xf32> to vector<16x32xf32>
    %133 = arith.mulf %130, %131 : vector<16x32xf32>
    %cst_29 = arith.constant dense<0.000000e+00> : vector<16xf32>
    %134 = vector.multi_reduction <add>, %133, %cst_29 [1] : vector<16x32xf32> to vector<16xf32>
    %135 = vector.shape_cast %134 : vector<16xf32> to vector<16x1xf32>
    %cst_30 = arith.constant 0.176776692 : f32
    %136 = vector.broadcast %cst_30 : f32 to vector<16x1xf32>
    %137 = arith.mulf %135, %136 : vector<16x1xf32>
    %138 = vector.broadcast %137 : vector<16x1xf32> to vector<16x32xf32>
    %139 = arith.mulf %138, %132 : vector<16x32xf32>
    %140 = vector.extract_strided_slice %8 {offsets = [0, 32], sizes = [16, 32], strides = [1, 1]} : vector<16x128xf32> to vector<16x32xf32>
    %141 = vector.extract_strided_slice %9 {offsets = [0, 32], sizes = [16, 32], strides = [1, 1]} : vector<16x128xf32> to vector<16x32xf32>
    %142 = arith.mulf %130, %140 : vector<16x32xf32>
    %cst_31 = arith.constant dense<0.000000e+00> : vector<16xf32>
    %143 = vector.multi_reduction <add>, %142, %cst_31 [1] : vector<16x32xf32> to vector<16xf32>
    %144 = vector.shape_cast %143 : vector<16xf32> to vector<16x1xf32>
    %cst_32 = arith.constant 0.176776692 : f32
    %145 = vector.broadcast %cst_32 : f32 to vector<16x1xf32>
    %146 = arith.mulf %144, %145 : vector<16x1xf32>
    %147 = vector.broadcast %146 : vector<16x1xf32> to vector<16x32xf32>
    %148 = arith.mulf %147, %141 : vector<16x32xf32>
    %149 = arith.addf %139, %148 : vector<16x32xf32>
    %150 = vector.extract_strided_slice %8 {offsets = [0, 64], sizes = [16, 32], strides = [1, 1]} : vector<16x128xf32> to vector<16x32xf32>
    %151 = vector.extract_strided_slice %9 {offsets = [0, 64], sizes = [16, 32], strides = [1, 1]} : vector<16x128xf32> to vector<16x32xf32>
    %152 = arith.mulf %130, %150 : vector<16x32xf32>
    %cst_33 = arith.constant dense<0.000000e+00> : vector<16xf32>
    %153 = vector.multi_reduction <add>, %152, %cst_33 [1] : vector<16x32xf32> to vector<16xf32>
    %154 = vector.shape_cast %153 : vector<16xf32> to vector<16x1xf32>
    %cst_34 = arith.constant 0.176776692 : f32
    %155 = vector.broadcast %cst_34 : f32 to vector<16x1xf32>
    %156 = arith.mulf %154, %155 : vector<16x1xf32>
    %157 = vector.broadcast %156 : vector<16x1xf32> to vector<16x32xf32>
    %158 = arith.mulf %157, %151 : vector<16x32xf32>
    %159 = arith.addf %149, %158 : vector<16x32xf32>
    %160 = vector.extract_strided_slice %8 {offsets = [0, 96], sizes = [16, 32], strides = [1, 1]} : vector<16x128xf32> to vector<16x32xf32>
    %161 = vector.extract_strided_slice %9 {offsets = [0, 96], sizes = [16, 32], strides = [1, 1]} : vector<16x128xf32> to vector<16x32xf32>
    %162 = arith.mulf %130, %160 : vector<16x32xf32>
    %cst_35 = arith.constant dense<0.000000e+00> : vector<16xf32>
    %163 = vector.multi_reduction <add>, %162, %cst_35 [1] : vector<16x32xf32> to vector<16xf32>
    %164 = vector.shape_cast %163 : vector<16xf32> to vector<16x1xf32>
    %cst_36 = arith.constant 0.176776692 : f32
    %165 = vector.broadcast %cst_36 : f32 to vector<16x1xf32>
    %166 = arith.mulf %164, %165 : vector<16x1xf32>
    %167 = vector.broadcast %166 : vector<16x1xf32> to vector<16x32xf32>
    %168 = arith.mulf %167, %161 : vector<16x32xf32>
    %169 = arith.addf %159, %168 : vector<16x32xf32>
    %170 = tpu.concatenate %49, %89, %129, %169 in 1 : vector<16x32xf32>, vector<16x32xf32>, vector<16x32xf32>, vector<16x32xf32> -> vector<16x128xf32>
    %c0_37 = arith.constant 0 : index
    %c0_38 = arith.constant 0 : index
    %171 = vector.load %arg4[%c0_37, %c0_38] : memref<16x128xf32, #tpu.memory_space<vmem>>, vector<16x128xf32>
    tpu.vector_store %arg4[%c0_37, %c0_38], %170 {strides = array<i32>} : memref<16x128xf32, #tpu.memory_space<vmem>>, vector<16x128xf32>,
    return
  }
  func.func @transform_0(%arg0: i32) -> (i32, i32) {
    %c0_i32 = arith.constant 0 : i32
    %c0_i32_0 = arith.constant 0 : i32
    return %arg0, %c0_i32 : i32, i32
  }
  func.func @transform_1(%arg0: i32) -> (i32, i32) {
    %c0_i32 = arith.constant 0 : i32
    %c0_i32_0 = arith.constant 0 : i32
    %c0_i32_1 = arith.constant 0 : i32
    return %c0_i32, %c0_i32_0 : i32, i32
  }
  func.func @transform_2(%arg0: i32) -> (i32, i32) {
    %c0_i32 = arith.constant 0 : i32
    %c0_i32_0 = arith.constant 0 : i32
    %c0_i32_1 = arith.constant 0 : i32
    return %c0_i32, %c0_i32_0 : i32, i32
  }
  func.func @transform_3(%arg0: i32) -> (i32, i32) {
    %c0_i32 = arith.constant 0 : i32
    %c0_i32_0 = arith.constant 0 : i32
    return %arg0, %c0_i32 : i32, i32
  }
}

</mosaic_0001>

<llo_original>
// kernel: tpu_custom_call.1
$region0: #{tpu_custom_call.1}
  #allocation0 [shape = 'u32[]', space=smem, size = 0x4, offset = 0x4, fixed_abs, tag = 'smem constant byte address 0x4 - core index']
  #allocation1 [shape = 'u32[144,128]{1,0:T(1,128)}', space=vmem, size = 0x12000, scoped, tag = 'internal scratch']
  %s0 = inlined_call_operand.hbm [shape: f32[16,128], index: 0, kind: input, shape index: {}]
  %s1 = inlined_call_operand.hbm [shape: bf16[128,384], index: 1, kind: input, shape index: {}]
  %s2 = inlined_call_operand.vmem [shape: f32[1,384], index: 2, kind: input, shape index: {}]
  %s3 = inlined_call_operand.hbm [shape: f32[16,128], index: 3, kind: output, shape index: {}]
  %s4 = sld [smem:[#allocation0]]
  $region30: #{tpu_custom_call.1} parent=0
    _
  %s6 = ssub.s32 1, %s4
  %s7 = scalar_select 0, %s6, %s4
  $region1: #{tpu_custom_call.1} parent=0
    #allocation2 [shape = 'u8[8192]{0}', space=vmem, size = 0x2000, scoped, tag = 'input window, operand 0, single buffered']
    #allocation3 [shape = 's32[1]{0}', space=sflag, size = 0x4, scoped, tag = 'scoped memory for tpu_custom_call.1']
    #allocation4 [shape = 's32[1]{0}', space=sflag, size = 0x4, scoped, tag = 'scoped memory for tpu_custom_call.1']
    #allocation5 [shape = 'u8[98304]{0}', space=vmem, size = 0x18000, scoped, tag = 'input window, operand 1, single buffered']
    #allocation6 [shape = 's32[1]{0}', space=sflag, size = 0x4, scoped, tag = 'scoped memory for tpu_custom_call.1']
    #allocation7 [shape = 'u8[8192]{0}', space=vmem, size = 0x2000, scoped, tag = 'output window, operand 0, single buffered']
    %8 = vsyncpa [#allocation3], 0
    %9 = vsyncpa [#allocation6], 0
    %10 = vsyncpa [#allocation4], 0
    // Predicated region
    $region2: #{tpu_custom_call.1} parent=1 // pred_check
      _
    $region3: #{tpu_custom_call.1} parent=1 // pred_check_branch
      %12 = sbr.rel (0) target = $region5
    $region4: #{tpu_custom_call.1} parent=1 // pred_region
      %s14 = ssub.s32 256, 256
      %15 = vsyncadd [#allocation3], %s14
      %s16 = sshll.u32 [#allocation2], 4
      %s17 = int_to_ptr.vmem [resolvable:$true] %s16
      %22 = dma.hbm_to_vmem [thread:$0]  %s0, 256, %s17, [#allocation3], 128, 128, 8
    $region5: #{tpu_custom_call.1} parent=1 // pred_fallthru
      _
    // Predicated region
    $region6: #{tpu_custom_call.1} parent=1 // pred_check
      _
    $region7: #{tpu_custom_call.1} parent=1 // pred_check_branch
      %24 = sbr.rel (0) target = $region9
    $region8: #{tpu_custom_call.1} parent=1 // pred_region
      %s26 = ssub.s32 3072, 3072
      %27 = vsyncadd [#allocation6], %s26
      %s28 = sshll.u32 [#allocation5], 4
      %s29 = int_to_ptr.vmem [resolvable:$true] %s28
      %34 = dma.hbm_to_vmem [thread:$0]  %s1, 3072, %s29, [#allocation6], 192, 192, 12
    $region9: #{tpu_custom_call.1} parent=1 // pred_fallthru
      _
    // Predicated region
    $region10: #{tpu_custom_call.1} parent=1 // pred_check
      _
    $region11: #{tpu_custom_call.1} parent=1 // pred_check_branch
      %36 = sbr.rel (0) target = $region13
    $region12: #{tpu_custom_call.1} parent=1 // pred_region
      _
    $region13: #{tpu_custom_call.1} parent=1 // pred_fallthru
      _
    // Predicated region
    $region14: #{tpu_custom_call.1} parent=1 // pred_check
      _
    $region15: #{tpu_custom_call.1} parent=1 // pred_check_branch
      %38 = sbr.rel (0) target = $region17
    $region16: #{tpu_custom_call.1} parent=1 // pred_region
      %39 = dma.done [#allocation3], 256
    $region17: #{tpu_custom_call.1} parent=1 // pred_fallthru
      _
    // Predicated region
    $region18: #{tpu_custom_call.1} parent=1 // pred_check
      _
    $region19: #{tpu_custom_call.1} parent=1 // pred_check_branch
      %41 = sbr.rel (0) target = $region21
    $region20: #{tpu_custom_call.1} parent=1 // pred_region
      %42 = dma.done [#allocation6], 3072
    $region21: #{tpu_custom_call.1} parent=1 // pred_fallthru
      _
    %v44 = vld [vmem:[#allocation2] sm:$0xff]
    %v45 = vld [vmem:[#allocation2 + $0x8] sm:$0xff]
    %v46 = vld [vmem:[#allocation5] sm:$0xff]
    %v47 = vld [vmem:[#allocation5 + $0x8] sm:$0xf]
    %v48 = vld [vmem:[#allocation5 + $0xc] sm:$0xff]
    %v49 = vld [vmem:[#allocation5 + $0x14] sm:$0xf]
    %v50 = vld [vmem:[#allocation5 + $0x18] sm:$0xff]
    %v51 = vld [vmem:[#allocation5 + $0x20] sm:$0xf]
    %v52 = vld [vmem:[#allocation5 + $0x24] sm:$0xff]
    %v53 = vld [vmem:[#allocation5 + $0x2c] sm:$0xf]
    %v54 = vld [vmem:[#allocation5 + $0x30] sm:$0xff]
    %v55 = vld [vmem:[#allocation5 + $0x38] sm:$0xf]
    %v56 = vld [vmem:[#allocation5 + $0x3c] sm:$0xff]
    %v57 = vld [vmem:[#allocation5 + $0x44] sm:$0xf]
    %v58 = vld [vmem:[#allocation5 + $0x48] sm:$0xff]
    %v59 = vld [vmem:[#allocation5 + $0x50] sm:$0xf]
    %v60 = vld [vmem:[#allocation5 + $0x54] sm:$0xff]
    %v61 = vld [vmem:[#allocation5 + $0x5c] sm:$0xf]
    %v62 = vld [vmem:[#allocation5 + $0x60] sm:$0xff]
    %v63 = vld [vmem:[#allocation5 + $0x68] sm:$0xf]
    %v64 = vld [vmem:[#allocation5 + $0x6c] sm:$0xff]
    %v65 = vld [vmem:[#allocation5 + $0x74] sm:$0xf]
    %v66 = vld [vmem:[#allocation5 + $0x78] sm:$0xff]
    %v67 = vld [vmem:[#allocation5 + $0x80] sm:$0xf]
    %v68 = vld [vmem:[#allocation5 + $0x84] sm:$0xff]
    %v69 = vld [vmem:[#allocation5 + $0x8c] sm:$0xf]
    %v70 = vld [vmem:[#allocation5 + $0x90] sm:$0xff]
    %v71 = vld [vmem:[#allocation5 + $0x98] sm:$0xf]
    %v72 = vld [vmem:[#allocation5 + $0x9c] sm:$0xff]
    %v73 = vld [vmem:[#allocation5 + $0xa4] sm:$0xf]
    %v74 = vld [vmem:[#allocation5 + $0xa8] sm:$0xff]
    %v75 = vld [vmem:[#allocation5 + $0xb0] sm:$0xf]
    %v76 = vld [vmem:[#allocation5 + $0xb4] sm:$0xff]
    %v77 = vld [vmem:[#allocation5 + $0xbc] sm:$0xf]
    %v78 = vpack.c.bf16 %v45, %v44
    %v79 = vld [vmem:[%s2] sm:$0x7]
    %v81 = vlaneseq
    %v82 = vshrl.u32 %v81, 7
    %v83 = vsub.s32 0, %v82
    %v84 = vrot.slane %v79, %v83
    %v85 = vlaneseq
    %v86 = vshrl.u32 %v85, 7
    %v87 = vsub.s32 1, %v86
    %v88 = vrot.slane %v79, %v87
    %v89 = vlaneseq
    %v90 = vshrl.u32 %v89, 7
    %v91 = vsub.s32 2, %v90
    %v92 = vrot.slane %v79, %v91
    %v128 = vunpack.c.l.b16 %v46
    %v129 = vunpack.c.h.b16 %v46
    %v130 = vunpack.c.l.b16 %v47
    %v131 = vunpack.c.l.b16 %v48
    %v132 = vunpack.c.h.b16 %v48
    %v133 = vunpack.c.l.b16 %v49
    %v134 = vunpack.c.l.b16 %v50
    %v135 = vunpack.c.h.b16 %v50
    %v136 = vunpack.c.l.b16 %v51
    %v137 = vunpack.c.l.b16 %v52
    %v138 = vunpack.c.h.b16 %v52
    %v139 = vunpack.c.l.b16 %v53
    %v140 = vunpack.c.l.b16 %v54
    %v141 = vunpack.c.h.b16 %v54
    %v142 = vunpack.c.l.b16 %v55
    %v143 = vunpack.c.l.b16 %v56
    %v144 = vunpack.c.h.b16 %v56
    %v145 = vunpack.c.l.b16 %v57
    %v146 = vunpack.c.l.b16 %v58
    %v147 = vunpack.c.h.b16 %v58
    %v148 = vunpack.c.l.b16 %v59
    %v149 = vunpack.c.l.b16 %v60
    %v150 = vunpack.c.h.b16 %v60
    %v151 = vunpack.c.l.b16 %v61
    %v152 = vunpack.c.l.b16 %v62
    %v153 = vunpack.c.h.b16 %v62
    %v154 = vunpack.c.l.b16 %v63
    %v155 = vunpack.c.l.b16 %v64
    %v156 = vunpack.c.h.b16 %v64
    %v157 = vunpack.c.l.b16 %v65
    %v158 = vunpack.c.l.b16 %v66
    %v159 = vunpack.c.h.b16 %v66
    %v160 = vunpack.c.l.b16 %v67
    %v161 = vunpack.c.l.b16 %v68
    %v162 = vunpack.c.h.b16 %v68
    %v163 = vunpack.c.l.b16 %v69
    %v164 = vunpack.c.l.b16 %v70
    %v165 = vunpack.c.h.b16 %v70
    %v166 = vunpack.c.l.b16 %v71
    %v167 = vunpack.c.l.b16 %v72
    %v168 = vunpack.c.h.b16 %v72
    %v169 = vunpack.c.l.b16 %v73
    %v170 = vunpack.c.l.b16 %v74
    %v171 = vunpack.c.h.b16 %v74
    %v172 = vunpack.c.l.b16 %v75
    %v173 = vunpack.c.l.b16 %v76
    %v174 = vunpack.c.h.b16 %v76
    %v175 = vunpack.c.l.b16 %v77
    %v176 = vpack.c.b16 %v131, %v128
    %v177 = vpack.c.b16 %v132, %v129
    %v178 = vpack.c.b16 %v133, %v130
    %v179 = vpack.c.b16 %v137, %v134
    %v180 = vpack.c.b16 %v138, %v135
    %v181 = vpack.c.b16 %v139, %v136
    %v182 = vpack.c.b16 %v143, %v140
    %v183 = vpack.c.b16 %v144, %v141
    %v184 = vpack.c.b16 %v145, %v142
    %v185 = vpack.c.b16 %v149, %v146
    %v186 = vpack.c.b16 %v150, %v147
    %v187 = vpack.c.b16 %v151, %v148
    %v188 = vpack.c.b16 %v155, %v152
    %v189 = vpack.c.b16 %v156, %v153
    %v190 = vpack.c.b16 %v157, %v154
    %v191 = vpack.c.b16 %v161, %v158
    %v192 = vpack.c.b16 %v162, %v159
    %v193 = vpack.c.b16 %v163, %v160
    %v194 = vpack.c.b16 %v167, %v164
    %v195 = vpack.c.b16 %v168, %v165
    %v196 = vpack.c.b16 %v169, %v166
    %v197 = vpack.c.b16 %v173, %v170
    %v198 = vpack.c.b16 %v174, %v171
    %v199 = vpack.c.b16 %v175, %v172
    %224 = vmatprep.subr.bf16.mxu0 %v177
    %225 = vmatpush1.bf16.msra.mxu0 %v176
    %226 = vmatprep.subr.bf16.mxu0 %v180
    %227 = vmatpush1.bf16.msra.mxu0 %v179
    %228 = vmatprep.subr.bf16.mxu0 %v183
    %229 = vmatpush1.bf16.msra.mxu0 %v182
    %230 = vmatprep.subr.bf16.mxu0 %v186
    %231 = vmatpush1.bf16.msra.mxu0 %v185
    %232 = vmatprep.subr.bf16.mxu0 %v189
    %233 = vmatpush1.bf16.msra.mxu0 %v188
    %234 = vmatprep.subr.bf16.mxu0 %v192
    %235 = vmatpush1.bf16.msra.mxu0 %v191
    %236 = vmatprep.subr.bf16.mxu0 %v195
    %237 = vmatpush1.bf16.msra.mxu0 %v194
    %238 = vmatprep.subr.bf16.mxu0 %v198
    %239 = vmatpush1.bf16.msra.mxu0 %v197
    %240 = vmatprep.subr.bf16.mxu0 0
    %241 = vmatpush1.bf16.msra.mxu0 0
    %242 = vmatprep.subr.bf16.mxu0 0
    %243 = vmatpush1.bf16.msra.mxu0 0
    %244 = vmatprep.subr.bf16.mxu0 0
    %245 = vmatpush1.bf16.msra.mxu0 0
    %246 = vmatprep.subr.bf16.mxu0 0
    %247 = vmatpush1.bf16.msra.mxu0 0
    %248 = vmatprep.subr.bf16.mxu0 0
    %249 = vmatpush1.bf16.msra.mxu0 0
    %250 = vmatprep.subr.bf16.mxu0 0
    %251 = vmatpush1.bf16.msra.mxu0 0
    %252 = vmatprep.subr.bf16.mxu0 0
    %253 = vmatpush1.bf16.msra.mxu0 0
    %254 = vmatprep.subr.bf16.mxu0 0
    %255 = vmatpush1.bf16.msra.mxu0 0
    %256 = vmatprep.mubr.bf16.mxu0 0
    %257 = vmatmul.mubr.bf16.gmra.mrb[0].mxu0 %v78
    %v258 = vpop.f32.mrb[0].mxu0
    %v259 = vadd.f32 %v84, %v258
    %v260 = vpop.f32.mrb[0].mxu0
    %v261 = vadd.f32 %v88, %v260
    %v262 = vpop.f32.mrb[0].mxu0
    %v263 = vadd.f32 %v84, %v262
    %v264 = vpop.f32.mrb[0].mxu0
    %v265 = vadd.f32 %v88, %v264
    %266 = vdwg.mxu0
    %267 = vmatprep.subr.bf16.mxu0 0
    %268 = vmatpush1.bf16.msra.mxu0 %v178
    %269 = vmatprep.subr.bf16.mxu0 0
    %270 = vmatpush1.bf16.msra.mxu0 %v181
    %271 = vmatprep.subr.bf16.mxu0 0
    %272 = vmatpush1.bf16.msra.mxu0 %v184
    %273 = vmatprep.subr.bf16.mxu0 0
    %274 = vmatpush1.bf16.msra.mxu0 %v187
    %275 = vmatprep.subr.bf16.mxu0 0
    %276 = vmatpush1.bf16.msra.mxu0 %v190
    %277 = vmatprep.subr.bf16.mxu0 0
    %278 = vmatpush1.bf16.msra.mxu0 %v193
    %279 = vmatprep.subr.bf16.mxu0 0
    %280 = vmatpush1.bf16.msra.mxu0 %v196
    %281 = vmatprep.subr.bf16.mxu0 0
    %282 = vmatpush1.bf16.msra.mxu0 %v199
    %283 = vmatprep.subr.bf16.mxu0 0
    %284 = vmatpush1.bf16.msra.mxu0 0
    %285 = vmatprep.subr.bf16.mxu0 0
    %286 = vmatpush1.bf16.msra.mxu0 0
    %287 = vmatprep.subr.bf16.mxu0 0
    %288 = vmatpush1.bf16.msra.mxu0 0
    %289 = vmatprep.subr.bf16.mxu0 0
    %290 = vmatpush1.bf16.msra.mxu0 0
    %291 = vmatprep.subr.bf16.mxu0 0
    %292 = vmatpush1.bf16.msra.mxu0 0
    %293 = vmatprep.subr.bf16.mxu0 0
    %294 = vmatpush1.bf16.msra.mxu0 0
    %295 = vmatprep.subr.bf16.mxu0 0
    %296 = vmatpush1.bf16.msra.mxu0 0
    %297 = vmatprep.subr.bf16.mxu0 0
    %298 = vmatpush1.bf16.msra.mxu0 0
    %299 = vmatprep.mubr.bf16.mxu0 0
    %300 = vmatmul.mubr.bf16.gmra.mrb[0].mxu0 %v78
    %v301 = vpop.f32.mrb[0].mxu0
    %v302 = vadd.f32 %v92, %v301
    %v303 = vpop.f32.mrb[0].mxu0
    %v304 = vpop.f32.mrb[0].mxu0
    %v305 = vadd.f32 %v92, %v304
    %v306 = vpop.f32.mrb[0].mxu0
    %307 = vdwg.mxu0
    %v308 = vmul.f32 %v259, %v261
    %v309 = vmul.f32 %v263, %v265
    %vm310 = vcmask 261120
    %v311 = vsel %vm310, %v308, 0.0
    %312 = vadd.xlane.f32.xlu0 %v311
    %v313 = vpop.xlane.xlu0 %312
    %v314 = vsel %vm310, %v309, 0.0
    %315 = vadd.xlane.f32.xlu0 %v314
    %v316 = vpop.xlane.xlu0 %315
    %v317 = vmul.f32 %v313, 0.17677669
    %v318 = vmul.f32 %v316, 0.17677669
    %v319 = vmul.f32 %v317, %v302
    %v320 = vmul.f32 %v318, %v305
    %323 = vrot.lane.b32.xlu0 %v261, 96
    %v324 = vpop.permute.xlu0 %323
    %325 = vrot.lane.b32.xlu0 %v265, 96
    %v326 = vpop.permute.xlu0 %325
    %v329 = vmul.f32 %v259, %v324
    %v330 = vmul.f32 %v263, %v326
    %v331 = vsel %vm310, %v329, 0.0
    %332 = vadd.xlane.f32.xlu0 %v331
    %v333 = vpop.xlane.xlu0 %332
    %v334 = vsel %vm310, %v330, 0.0
    %335 = vadd.xlane.f32.xlu0 %v334
    %v336 = vpop.xlane.xlu0 %335
    %v337 = vmul.f32 %v333, 0.17677669
    %v338 = vmul.f32 %v336, 0.17677669
    %v339 = vmul.f32 %v337, %v302
    %v340 = vmul.f32 %v338, %v305
    %343 = vrot.lane.b32.xlu0 %v339, 96
    %v344 = vpop.permute.xlu0 %343
    %345 = vrot.lane.b32.xlu0 %v340, 96
    %v346 = vpop.permute.xlu0 %345
    %v349 = vadd.f32 %v319, %v344
    %v350 = vadd.f32 %v320, %v346
    %351 = vrot.lane.b32.xlu0 %v261, 64
    %v352 = vpop.permute.xlu0 %351
    %353 = vrot.lane.b32.xlu0 %v265, 64
    %v354 = vpop.permute.xlu0 %353
    %v357 = vmul.f32 %v259, %v352
    %v358 = vmul.f32 %v263, %v354
    %v359 = vsel %vm310, %v357, 0.0
    %360 = vadd.xlane.f32.xlu0 %v359
    %v361 = vpop.xlane.xlu0 %360
    %v362 = vsel %vm310, %v358, 0.0
    %363 = vadd.xlane.f32.xlu0 %v362
    %v364 = vpop.xlane.xlu0 %363
    %v365 = vmul.f32 %v361, 0.17677669
    %v366 = vmul.f32 %v364, 0.17677669
    %v367 = vmul.f32 %v365, %v302
    %v368 = vmul.f32 %v366, %v305
    %371 = vrot.lane.b32.xlu0 %v367, 64
    %v372 = vpop.permute.xlu0 %371
    %373 = vrot.lane.b32.xlu0 %v368, 64
    %v374 = vpop.permute.xlu0 %373
    %v377 = vadd.f32 %v349, %v372
    %v378 = vadd.f32 %v350, %v374
    %379 = vrot.lane.b32.xlu0 %v261, 32
    %v380 = vpop.permute.xlu0 %379
    %381 = vrot.lane.b32.xlu0 %v265, 32
    %v382 = vpop.permute.xlu0 %381
    %v385 = vmul.f32 %v259, %v380
    %v386 = vmul.f32 %v263, %v382
    %v387 = vsel %vm310, %v385, 0.0
    %388 = vadd.xlane.f32.xlu0 %v387
    %v389 = vpop.xlane.xlu0 %388
    %v390 = vsel %vm310, %v386, 0.0
    %391 = vadd.xlane.f32.xlu0 %v390
    %v392 = vpop.xlane.xlu0 %391
    %v393 = vmul.f32 %v389, 0.17677669
    %v394 = vmul.f32 %v392, 0.17677669
    %v395 = vmul.f32 %v393, %v302
    %v396 = vmul.f32 %v394, %v305
    %399 = vrot.lane.b32.xlu0 %v395, 32
    %v400 = vpop.permute.xlu0 %399
    %401 = vrot.lane.b32.xlu0 %v396, 32
    %v402 = vpop.permute.xlu0 %401
    %v405 = vadd.f32 %v377, %v400
    %v406 = vadd.f32 %v378, %v402
    %409 = vrot.lane.b32.xlu0 %v385, 96
    %v410 = vpop.permute.xlu0 %409
    %411 = vrot.lane.b32.xlu0 %v386, 96
    %v412 = vpop.permute.xlu0 %411
    %v415 = vsel %vm310, %v410, 0.0
    %416 = vadd.xlane.f32.xlu0 %v415
    %v417 = vpop.xlane.xlu0 %416
    %v418 = vsel %vm310, %v412, 0.0
    %419 = vadd.xlane.f32.xlu0 %v418
    %v420 = vpop.xlane.xlu0 %419
    %v421 = vmul.f32 %v417, 0.17677669
    %v422 = vmul.f32 %v420, 0.17677669
    %v423 = vmul.f32 %v421, %v302
    %v424 = vmul.f32 %v422, %v305
    %427 = vrot.lane.b32.xlu0 %v308, 96
    %v428 = vpop.permute.xlu0 %427
    %429 = vrot.lane.b32.xlu0 %v309, 96
    %v430 = vpop.permute.xlu0 %429
    %v433 = vsel %vm310, %v428, 0.0
    %434 = vadd.xlane.f32.xlu0 %v433
    %v435 = vpop.xlane.xlu0 %434
    %v436 = vsel %vm310, %v430, 0.0
    %437 = vadd.xlane.f32.xlu0 %v436
    %v438 = vpop.xlane.xlu0 %437
    %v439 = vmul.f32 %v435, 0.17677669
    %v440 = vmul.f32 %v438, 0.17677669
    %v441 = vmul.f32 %v439, %v302
    %v442 = vmul.f32 %v440, %v305
    %445 = vrot.lane.b32.xlu0 %v441, 96
    %v446 = vpop.permute.xlu0 %445
    %447 = vrot.lane.b32.xlu0 %v442, 96
    %v448 = vpop.permute.xlu0 %447
    %v451 = vadd.f32 %v423, %v446
    %v452 = vadd.f32 %v424, %v448
    %455 = vrot.lane.b32.xlu0 %v329, 96
    %v456 = vpop.permute.xlu0 %455
    %457 = vrot.lane.b32.xlu0 %v330, 96
    %v458 = vpop.permute.xlu0 %457
    %v461 = vsel %vm310, %v456, 0.0
    %462 = vadd.xlane.f32.xlu0 %v461
    %v463 = vpop.xlane.xlu0 %462
    %v464 = vsel %vm310, %v458, 0.0
    %465 = vadd.xlane.f32.xlu0 %v464
    %v466 = vpop.xlane.xlu0 %465
    %v467 = vmul.f32 %v463, 0.17677669
    %v468 = vmul.f32 %v466, 0.17677669
    %v469 = vmul.f32 %v467, %v302
    %v470 = vmul.f32 %v468, %v305
    %473 = vrot.lane.b32.xlu0 %v469, 64
    %v474 = vpop.permute.xlu0 %473
    %475 = vrot.lane.b32.xlu0 %v470, 64
    %v476 = vpop.permute.xlu0 %475
    %v479 = vadd.f32 %v451, %v474
    %v480 = vadd.f32 %v452, %v476
    %483 = vrot.lane.b32.xlu0 %v357, 96
    %v484 = vpop.permute.xlu0 %483
    %485 = vrot.lane.b32.xlu0 %v358, 96
    %v486 = vpop.permute.xlu0 %485
    %v489 = vsel %vm310, %v484, 0.0
    %490 = vadd.xlane.f32.xlu0 %v489
    %v491 = vpop.xlane.xlu0 %490
    %v492 = vsel %vm310, %v486, 0.0
    %493 = vadd.xlane.f32.xlu0 %v492
    %v494 = vpop.xlane.xlu0 %493
    %v495 = vmul.f32 %v491, 0.17677669
    %v496 = vmul.f32 %v494, 0.17677669
    %v497 = vmul.f32 %v495, %v302
    %v498 = vmul.f32 %v496, %v305
    %501 = vrot.lane.b32.xlu0 %v497, 32
    %v502 = vpop.permute.xlu0 %501
    %503 = vrot.lane.b32.xlu0 %v498, 32
    %v504 = vpop.permute.xlu0 %503
    %v507 = vadd.f32 %v479, %v502
    %v508 = vadd.f32 %v480, %v504
    %509 = vrot.lane.b32.xlu0 %v357, 64
    %v510 = vpop.permute.xlu0 %509
    %511 = vrot.lane.b32.xlu0 %v358, 64
    %v512 = vpop.permute.xlu0 %511
    %v515 = vsel %vm310, %v510, 0.0
    %516 = vadd.xlane.f32.xlu0 %v515
    %v517 = vpop.xlane.xlu0 %516
    %v518 = vsel %vm310, %v512, 0.0
    %519 = vadd.xlane.f32.xlu0 %v518
    %v520 = vpop.xlane.xlu0 %519
    %v521 = vmul.f32 %v517, 0.17677669
    %v522 = vmul.f32 %v520, 0.17677669
    %v523 = vmul.f32 %v521, %v302
    %v524 = vmul.f32 %v522, %v305
    %525 = vrot.lane.b32.xlu0 %v385, 64
    %v526 = vpop.permute.xlu0 %525
    %527 = vrot.lane.b32.xlu0 %v386, 64
    %v528 = vpop.permute.xlu0 %527
    %v531 = vsel %vm310, %v526, 0.0
    %532 = vadd.xlane.f32.xlu0 %v531
    %v533 = vpop.xlane.xlu0 %532
    %v534 = vsel %vm310, %v528, 0.0
    %535 = vadd.xlane.f32.xlu0 %v534
    %v536 = vpop.xlane.xlu0 %535
    %v537 = vmul.f32 %v533, 0.17677669
    %v538 = vmul.f32 %v536, 0.17677669
    %v539 = vmul.f32 %v537, %v302
    %v540 = vmul.f32 %v538, %v305
    %543 = vrot.lane.b32.xlu0 %v539, 96
    %v544 = vpop.permute.xlu0 %543
    %545 = vrot.lane.b32.xlu0 %v540, 96
    %v546 = vpop.permute.xlu0 %545
    %v549 = vadd.f32 %v523, %v544
    %v550 = vadd.f32 %v524, %v546
    %551 = vrot.lane.b32.xlu0 %v308, 64
    %v552 = vpop.permute.xlu0 %551
    %553 = vrot.lane.b32.xlu0 %v309, 64
    %v554 = vpop.permute.xlu0 %553
    %v557 = vsel %vm310, %v552, 0.0
    %558 = vadd.xlane.f32.xlu0 %v557
    %v559 = vpop.xlane.xlu0 %558
    %v560 = vsel %vm310, %v554, 0.0
    %561 = vadd.xlane.f32.xlu0 %v560
    %v562 = vpop.xlane.xlu0 %561
    %v563 = vmul.f32 %v559, 0.17677669
    %v564 = vmul.f32 %v562, 0.17677669
    %v565 = vmul.f32 %v563, %v302
    %v566 = vmul.f32 %v564, %v305
    %569 = vrot.lane.b32.xlu0 %v565, 64
    %v570 = vpop.permute.xlu0 %569
    %571 = vrot.lane.b32.xlu0 %v566, 64
    %v572 = vpop.permute.xlu0 %571
    %v575 = vadd.f32 %v549, %v570
    %v576 = vadd.f32 %v550, %v572
    %577 = vrot.lane.b32.xlu0 %v329, 64
    %v578 = vpop.permute.xlu0 %577
    %579 = vrot.lane.b32.xlu0 %v330, 64
    %v580 = vpop.permute.xlu0 %579
    %v583 = vsel %vm310, %v578, 0.0
    %584 = vadd.xlane.f32.xlu0 %v583
    %v585 = vpop.xlane.xlu0 %584
    %v586 = vsel %vm310, %v580, 0.0
    %587 = vadd.xlane.f32.xlu0 %v586
    %v588 = vpop.xlane.xlu0 %587
    %v589 = vmul.f32 %v585, 0.17677669
    %v590 = vmul.f32 %v588, 0.17677669
    %v591 = vmul.f32 %v589, %v302
    %v592 = vmul.f32 %v590, %v305
    %595 = vrot.lane.b32.xlu0 %v591, 32
    %v596 = vpop.permute.xlu0 %595
    %597 = vrot.lane.b32.xlu0 %v592, 32
    %v598 = vpop.permute.xlu0 %597
    %v601 = vadd.f32 %v575, %v596
    %v602 = vadd.f32 %v576, %v598
    %603 = vrot.lane.b32.xlu0 %v329, 32
    %v604 = vpop.permute.xlu0 %603
    %605 = vrot.lane.b32.xlu0 %v330, 32
    %v606 = vpop.permute.xlu0 %605
    %v609 = vsel %vm310, %v604, 0.0
    %610 = vadd.xlane.f32.xlu0 %v609
    %v611 = vpop.xlane.xlu0 %610
    %v612 = vsel %vm310, %v606, 0.0
    %613 = vadd.xlane.f32.xlu0 %v612
    %v614 = vpop.xlane.xlu0 %613
    %v615 = vmul.f32 %v611, 0.17677669
    %v616 = vmul.f32 %v614, 0.17677669
    %v617 = vmul.f32 %v615, %v302
    %v618 = vmul.f32 %v616, %v305
    %619 = vrot.lane.b32.xlu0 %v357, 32
    %v620 = vpop.permute.xlu0 %619
    %621 = vrot.lane.b32.xlu0 %v358, 32
    %v622 = vpop.permute.xlu0 %621
    %v625 = vsel %vm310, %v620, 0.0
    %626 = vadd.xlane.f32.xlu0 %v625
    %v627 = vpop.xlane.xlu0 %626
    %v628 = vsel %vm310, %v622, 0.0
    %629 = vadd.xlane.f32.xlu0 %v628
    %v630 = vpop.xlane.xlu0 %629
    %v631 = vmul.f32 %v627, 0.17677669
    %v632 = vmul.f32 %v630, 0.17677669
    %v633 = vmul.f32 %v631, %v302
    %v634 = vmul.f32 %v632, %v305
    %637 = vrot.lane.b32.xlu0 %v633, 96
    %v638 = vpop.permute.xlu0 %637
    %639 = vrot.lane.b32.xlu0 %v634, 96
    %v640 = vpop.permute.xlu0 %639
    %v643 = vadd.f32 %v617, %v638
    %v644 = vadd.f32 %v618, %v640
    %645 = vrot.lane.b32.xlu0 %v385, 32
    %v646 = vpop.permute.xlu0 %645
    %647 = vrot.lane.b32.xlu0 %v386, 32
    %v648 = vpop.permute.xlu0 %647
    %v651 = vsel %vm310, %v646, 0.0
    %652 = vadd.xlane.f32.xlu0 %v651
    %v653 = vpop.xlane.xlu0 %652
    %v654 = vsel %vm310, %v648, 0.0
    %655 = vadd.xlane.f32.xlu0 %v654
    %v656 = vpop.xlane.xlu0 %655
    %v657 = vmul.f32 %v653, 0.17677669
    %v658 = vmul.f32 %v656, 0.17677669
    %v659 = vmul.f32 %v657, %v302
    %v660 = vmul.f32 %v658, %v305
    %663 = vrot.lane.b32.xlu0 %v659, 64
    %v664 = vpop.permute.xlu0 %663
    %665 = vrot.lane.b32.xlu0 %v660, 64
    %v666 = vpop.permute.xlu0 %665
    %v669 = vadd.f32 %v643, %v664
    %v670 = vadd.f32 %v644, %v666
    %671 = vrot.lane.b32.xlu0 %v308, 32
    %v672 = vpop.permute.xlu0 %671
    %673 = vrot.lane.b32.xlu0 %v309, 32
    %v674 = vpop.permute.xlu0 %673
    %v677 = vsel %vm310, %v672, 0.0
    %678 = vadd.xlane.f32.xlu0 %v677
    %v679 = vpop.xlane.xlu0 %678
    %v680 = vsel %vm310, %v674, 0.0
    %681 = vadd.xlane.f32.xlu0 %v680
    %v682 = vpop.xlane.xlu0 %681
    %v683 = vmul.f32 %v679, 0.17677669
    %v684 = vmul.f32 %v682, 0.17677669
    %v685 = vmul.f32 %v683, %v302
    %v686 = vmul.f32 %v684, %v305
    %689 = vrot.lane.b32.xlu0 %v685, 32
    %v690 = vpop.permute.xlu0 %689
    %691 = vrot.lane.b32.xlu0 %v686, 32
    %v692 = vpop.permute.xlu0 %691
    %v695 = vadd.f32 %v669, %v690
    %v696 = vadd.f32 %v670, %v692
    %699 = vrot.lane.b32.xlu0 %v507, 32
    %v700 = vpop.permute.xlu0 %699
    %701 = vrot.lane.b32.xlu0 %v508, 32
    %v702 = vpop.permute.xlu0 %701
    %707 = vrot.lane.b32.xlu0 %v601, 64
    %v708 = vpop.permute.xlu0 %707
    %709 = vrot.lane.b32.xlu0 %v602, 64
    %v710 = vpop.permute.xlu0 %709
    %715 = vrot.lane.b32.xlu0 %v695, 96
    %v716 = vpop.permute.xlu0 %715
    %717 = vrot.lane.b32.xlu0 %v696, 96
    %v718 = vpop.permute.xlu0 %717
    %v721 = vsel %vm310, %v405, %v700
    %v722 = vsel %vm310, %v406, %v702
    %vm723 = vcmask 523264
    %v724 = vsel %vm723, %v721, %v708
    %v725 = vsel %vm723, %v722, %v710
    %vm726 = vcmask 785408
    %v727 = vsel %vm726, %v724, %v716
    %v728 = vsel %vm726, %v725, %v718
    %729 = vst [vmem:[#allocation7] sm:$0xff] %v727
    %730 = vst [vmem:[#allocation7 + $0x8] sm:$0xff] %v728
    // Predicated region
    $region22: #{tpu_custom_call.1} parent=1 // pred_check
      _
    $region23: #{tpu_custom_call.1} parent=1 // pred_check_branch
      %732 = sbr.rel (0) target = $region25
    $region24: #{tpu_custom_call.1} parent=1 // pred_region
      %s734 = ssub.s32 256, 256
      %735 = vsyncadd [#allocation4], %s734
      %s736 = sshll.u32 [#allocation7], 4
      %s737 = int_to_ptr.vmem [resolvable:$true] %s736
      %742 = dma.vmem_to_hbm [thread:$0]  %s737, 256, %s3, [#allocation4], 128, 128, 8
    $region25: #{tpu_custom_call.1} parent=1 // pred_fallthru
      _
    // Predicated region
    $region26: #{tpu_custom_call.1} parent=1 // pred_check
      _
    $region27: #{tpu_custom_call.1} parent=1 // pred_check_branch
      %744 = sbr.rel (0) target = $region29
    $region28: #{tpu_custom_call.1} parent=1 // pred_region
      %745 = dma.done [#allocation4], 256
    $region29: #{tpu_custom_call.1} parent=1 // pred_fallthru
      _
    %746 = vsyncpa [#allocation3], 1
    %747 = vsyncpa [#allocation6], 1
    %748 = vsyncpa [#allocation4], 1

</llo_original>
